<compile_context>
chip_gen: v6e
topology: v6e:2x2x1
jax: 0.10.0
libtpu: 0.0.40
codegen_flags: <defaults>
</compile_context>

<pallas_src>
import jax
import jax.numpy as jnp
import numpy as np
from jax.experimental import pallas as pl
from jax.experimental.pallas import tpu as pltpu


# ----------------------------------------------------------------------------
# Kernel 0: xw = feat @ W_gcn, computed once (hoisted out of the GCN row grid).
# ----------------------------------------------------------------------------
def feat_proj_kernel(feat_ref, w_ref, xw_ref):
    xw_ref[...] = jnp.dot(feat_ref[...], w_ref[...],
                          preferred_element_type=jnp.float32)


# ----------------------------------------------------------------------------
# Kernel 1: row-tiled GCN layer fused with the two node-level projections.
#   emb_tile = relu(adj_tile @ xw + b)        (TM, H)
#   p12_tile = emb_tile @ [w1 | w2]           (TM, 2)
# Only p12 (all the downstream pipeline needs) is written back to HBM.
# Dropout is identity at inference (torch eval mode).
# ----------------------------------------------------------------------------
def gcn_proj_kernel(adj_ref, xw_ref, b_ref, w12_ref, p12_ref):
    h = jnp.dot(adj_ref[...], xw_ref[...],
                preferred_element_type=jnp.float32) + b_ref[...]
    emb = jnp.maximum(h, 0.0)                       # ReLU
    p12_ref[...] = jnp.dot(emb, w12_ref[...],
                           preferred_element_type=jnp.float32)
    # TODO(synk): on v7x with TM % 128 == 0, emit this transposed as a
    # lane-dense (2, TM) slab (unmasked vst) and drop the host reshape of p2.


# ----------------------------------------------------------------------------
# Kernel 2: row-tiled masked (sparse-pattern) softmax + residual combine.
#   z[i, j] = p1[i] + p2[j]        (b_mlp already folded into p1 on the host)
#   pi      = row-softmax of z restricted to the edge pattern (empty rows -> 0)
#   out     = adj + com_lambda * pi
# The edge pattern comes from adj != 0: v_ori is the row-normalized adjacency
# built from the same edge list, so its nonzeros are exactly the edges
# (entries are strictly positive 1/deg).  If a preprocessed adjacency could
# carry exact zeros on real edges, pass an explicit mask instead (v_indices is
# the ground truth).
# ----------------------------------------------------------------------------
def softmax_combine_kernel(adj_ref, p1_ref, p2_ref, lam_ref, out_ref):
    adj = adj_ref[...]                              # (TM, N)
    mask = adj != 0.0                               # edge pattern
    z = p1_ref[...] + p2_ref[...]                   # (TM,1)+(1,N) -> (TM,N)

    neg_big = jnp.float32(-1e30)
    zm = jnp.where(mask, z, neg_big)
    m_raw = jnp.max(zm, axis=1, keepdims=True)      # single XLU reduction
    row_has_edge = m_raw > jnp.float32(-1e29)       # recovered from masked max
    m = jnp.where(row_has_edge, m_raw, 0.0)
    e = jnp.where(mask, jnp.exp(zm - m), 0.0)       # zm - m: never overflows
    denom = jnp.sum(e, axis=1, keepdims=True)
    # Per-row reciprocal with com_lambda folded in: per-element work is a
    # single multiply instead of divide + multiply.  approx=True would move
    # the reciprocal onto the EUP slot (v7x); kept exact for f32 parity here.
    scale = lam_ref[0] * pl.reciprocal(jnp.where(row_has_edge, denom, 1.0))
    out_ref[...] = adj + e * scale


# ----------------------------------------------------------------------------
# Generation-aware scoped-VMEM limit (~5/8 of physical per-core VMEM):
#   v7x 64 MiB -> 40 MiB,  v5e/v6e 128 MiB -> 80 MiB.
# ----------------------------------------------------------------------------
def _vmem_limit_bytes():
    cap = 64 << 20                                  # conservative fallback (v7x)
    try:
        info = pltpu.get_tpu_info()
        cap = int(getattr(info, "vmem_capacity_bytes", cap)) or cap
    except Exception:
        pass
    return int((cap * 5) // 8)


# ----------------------------------------------------------------------------
# Tile-size heuristic: largest row tile TM (multiple of 8, dividing N) whose
# n_strips live (TM, N) f32 strips stay within the budget.  A user-requested
# tile is clamped to the same budget (review correctness concern).
# ----------------------------------------------------------------------------
def _pick_row_tile(n_rows, n_cols, *, n_strips, vmem_budget_bytes,
                   cap=512, requested=None, bytes_per_elem=4):
    if n_rows % 8 != 0:
        return n_rows                               # single full block
    max_tm = max(8, vmem_budget_bytes // (n_strips * n_cols * bytes_per_elem))
    tm = min(n_rows, cap, int(max_tm))
    if requested is not None:
        tm = min(int(requested), tm)
    tm = max(8, (tm // 8) * 8)
    while tm > 8 and n_rows % tm != 0:
        tm -= 8
    return tm if n_rows % tm == 0 else n_rows


# ----------------------------------------------------------------------------
# Python wrapper: GenView.forward
# ----------------------------------------------------------------------------
def gen_view_forward(v_ori, feat, v_indices, params, com_lambda, *, row_tile=None):
    # v_indices is not needed: the edge pattern is taken from v_ori's nonzeros
    # (identical by construction; see softmax_combine_kernel docstring).
    del v_indices
    N, F = feat.shape
    H = params["w_gcn"].shape[1]

    vmem_limit = _vmem_limit_bytes()
    budget = (vmem_limit * 3) // 4                  # headroom for residents

    # Stage 1 keeps ~2 live (TM,N) strips (adj double-buffered; output is tiny);
    # stage 2 keeps ~4 (adj + output, both double-buffered).
    tm1 = _pick_row_tile(N, N, n_strips=2, vmem_budget_bytes=budget,
                         cap=1024, requested=row_tile)
    tm2 = _pick_row_tile(N, N, n_strips=4, vmem_budget_bytes=budget,
                         cap=512, requested=row_tile)

    cp = pltpu.CompilerParams(dimension_semantics=("parallel",),
                              vmem_limit_bytes=vmem_limit)
    vmem_full = pl.BlockSpec(memory_space=pltpu.MemorySpace.VMEM)
    smem_full = pl.BlockSpec(memory_space=pltpu.MemorySpace.SMEM)

    # gen_mlp weight (1, 2H) split into the two node-level projections (H, 2).
    w12 = params["w_mlp"].reshape(2, H).T           # [:, 0] = w1, [:, 1] = w2
    b_gcn = params["b_gcn"].reshape(1, H)

    # ---- stage 0: xw = feat @ W_gcn (once, hoisted out of the row grid) -----
    xw = pl.pallas_call(
        feat_proj_kernel,
        out_shape=jax.ShapeDtypeStruct((N, H), jnp.float32),
        grid=(N // tm1,),
        in_specs=[
            pl.BlockSpec((tm1, F), lambda i: (i, 0)),    # feat row strip
            vmem_full,                                   # W_gcn (resident)
        ],
        out_specs=pl.BlockSpec((tm1, H), lambda i: (i, 0)),
        compiler_params=cp,
        cost_estimate=pl.CostEstimate(
            flops=2 * N * F * H, transcendentals=0,
            bytes_accessed=4 * (N * F + F * H + N * H)),
    )(feat, params["w_gcn"])

    # ---- stage 1: GCN + fused node projections -> p12 (N, 2) ----------------
    p12 = pl.pallas_call(
        gcn_proj_kernel,
        out_shape=jax.ShapeDtypeStruct((N, 2), jnp.float32),
        grid=(N // tm1,),
        in_specs=[
            pl.BlockSpec((tm1, N), lambda i: (i, 0)),    # adj row strip
            vmem_full,                                   # xw (resident)
            vmem_full,                                   # b_gcn
            vmem_full,                                   # w12
        ],
        out_specs=pl.BlockSpec((tm1, 2), lambda i: (i, 0)),
        compiler_params=cp,
        cost_estimate=pl.CostEstimate(
            flops=2 * N * N * H + 5 * N * H, transcendentals=0,
            bytes_accessed=4 * (N * N + N * H + 3 * H + 2 * N)),
    )(v_ori, xw, b_gcn, w12)

    # Fold b_mlp into the src-side projection on the host (one fewer VPU add
    # over all N^2 elements in stage 2).
    b_mlp = jnp.asarray(params["b_mlp"], jnp.float32).reshape(1, 1)
    p1_col = p12[:, 0:1] + b_mlp          # (N, 1)  src-side projection + bias
    p2_row = p12[:, 1:2].reshape(1, N)    # (1, N)  dst-side projection, lane-dense

    lam = jnp.asarray(com_lambda, jnp.float32).reshape(1)

    # ---- stage 2: masked row softmax over the edge pattern + combine --------
    # TODO(synk): on v7x, sweep pipeline_mode=pl.Buffered(3) on the adj strip
    #             if profiling shows exposed DMA at small TM.
    gen_v = pl.pallas_call(
        softmax_combine_kernel,
        out_shape=jax.ShapeDtypeStruct((N, N), jnp.float32),
        grid=(N // tm2,),
        in_specs=[
            pl.BlockSpec((tm2, N), lambda i: (i, 0)),    # adj row strip
            pl.BlockSpec((tm2, 1), lambda i: (i, 0)),    # p1 rows (+ b_mlp)
            vmem_full,                                   # p2 row vector (resident)
            smem_full,                                   # [com_lambda]
        ],
        out_specs=pl.BlockSpec((tm2, N), lambda i: (i, 0)),
        compiler_params=cp,
        cost_estimate=pl.CostEstimate(
            flops=8 * N * N, transcendentals=N * N,
            bytes_accessed=4 * (2 * N * N + 3 * N + 1)),
    )(v_ori, p1_col, p2_row, lam)
    return gen_v


# ----------------------------------------------------------------------------
# Pure-JAX reference (mirrors the original PyTorch dataflow: gather/concat/
# scatter + sparse-pattern softmax) for a correctness check.
# ----------------------------------------------------------------------------
def gen_view_reference(v_ori, feat, v_indices, params, com_lambda):
    emb = jnp.maximum(v_ori @ (feat @ params["w_gcn"]) + params["b_gcn"], 0.0)
    src, dst = v_indices[0], v_indices[1]
    ff = jnp.concatenate([emb[src], emb[dst]], axis=-1)
    temp = (ff @ params["w_mlp"].T + params["b_mlp"]).reshape(-1)
    N = v_ori.shape[0]
    z = jnp.full((N, N), -jnp.inf).at[src, dst].set(temp)
    mask = jnp.zeros((N, N)).at[src, dst].set(1.0)
    m = jnp.max(jnp.where(mask > 0, z, -jnp.inf), axis=1, keepdims=True)
    m = jnp.where(jnp.isfinite(m), m, 0.0)
    e = jnp.where(mask > 0, jnp.exp(z - m), 0.0)
    s = jnp.sum(e, axis=1, keepdims=True)
    pi = jnp.where(s > 0, e / jnp.where(s > 0, s, 1.0), 0.0)
    return v_ori + com_lambda * pi


if __name__ == "__main__":
    N, F, H = 128, 16, 32          # num_node, num_feature, hid
    com_lambda = 0.5
    dropout = 0.5                  # identity at inference

    key = jax.random.PRNGKey(0)
    k_feat, k_w, k_b, k_mlp = jax.random.split(key, 4)

    # Deterministic synthetic parameters (xavier-ish normal init).
    params = {
        "w_gcn": jax.random.normal(k_w, (F, H), jnp.float32) * (2.0 / (F + H)) ** 0.5,
        "b_gcn": jax.random.normal(k_b, (H,), jnp.float32) * 0.1,
        "w_mlp": jax.random.normal(k_mlp, (1, 2 * H), jnp.float32)
                 * 1.414 * (2.0 / (2 * H + 1)) ** 0.5,
        "b_mlp": jnp.zeros((1,), jnp.float32),
    }

    # Node features.
    feat = jax.random.normal(k_feat, (N, F), jnp.float32)

    # Deterministic edge list: self-loop, i->i+1, i->i+3 (all unique pairs).
    src = np.concatenate([np.arange(N)] * 3)
    dst = np.concatenate([np.arange(N), (np.arange(N) + 1) % N, (np.arange(N) + 3) % N])
    v_indices = jnp.asarray(np.stack([src, dst]), jnp.int32)   # (2, E), E = 384

    # Dense row-normalized adjacency built from the edge list (positive 1/deg).
    adj_np = np.zeros((N, N), np.float32)
    adj_np[src, dst] = 1.0
    adj_np = adj_np / adj_np.sum(axis=1, keepdims=True)
    v_ori = jnp.asarray(adj_np)

    # row_tile=64 -> grids of size 2 so the tiled pipeline is actually exercised.
    out = gen_view_forward(v_ori, feat, v_indices, params, com_lambda, row_tile=64)
    out = jax.block_until_ready(out)

    ref = gen_view_reference(v_ori, feat, v_indices, params, com_lambda)
    if not np.allclose(np.asarray(out), np.asarray(ref), atol=1e-4, rtol=1e-4):
        raise AssertionError("Pallas output does not match reference")

    print("KERNEL_OK")
</pallas_src>

<mosaic_0001>
module attributes {stable_mosaic.version = 11 : i64} {
  func.func @feat_proj_kernel(%arg0: i32, %arg1: memref<64x16xf32, #tpu.memory_space<vmem>>, %arg2: memref<16x32xf32, #tpu.memory_space<vmem>>, %arg3: memref<64x32xf32, #tpu.memory_space<vmem>>) attributes {dimension_semantics = [#tpu.dimension_semantics<parallel>], iteration_bounds = array<i64: 2>, scalar_prefetch = 0 : i64, scratch_operands = 0 : i64, tpu.core_type = #tpu.core_type<tc>, window_params = [{transform_indices = @transform_0, window_bounds = array<i64: 64, 16>}, {pipeline_mode = #tpu.pipeline_mode<synchronous>, transform_indices = @transform_1, window_bounds = array<i64: 16, 32>}, {transform_indices = @transform_2, window_bounds = array<i64: 64, 32>}]} {
    %c0 = arith.constant 0 : index
    %c0_0 = arith.constant 0 : index
    %0 = vector.load %arg1[%c0, %c0_0] : memref<64x16xf32, #tpu.memory_space<vmem>>, vector<64x16xf32>
    %c0_1 = arith.constant 0 : index
    %c0_2 = arith.constant 0 : index
    %1 = vector.load %arg2[%c0_1, %c0_2] : memref<16x32xf32, #tpu.memory_space<vmem>>, vector<16x32xf32>
    %cst = arith.constant dense<0.000000e+00> : vector<64x32xf32>
    %2 = tpu.matmul %0, %1, %cst {dimension_numbers = #tpu.dot_dimension_numbers<[1], [0], [0], [1], [0, 0, 1, 1], [], []>} : vector<64x16xf32>, vector<16x32xf32>, vector<64x32xf32> -> vector<64x32xf32>
    %c0_3 = arith.constant 0 : index
    %c0_4 = arith.constant 0 : index
    %3 = vector.load %arg3[%c0_3, %c0_4] : memref<64x32xf32, #tpu.memory_space<vmem>>, vector<64x32xf32>
    tpu.vector_store %arg3[%c0_3, %c0_4], %2 {strides = array<i32>} : memref<64x32xf32, #tpu.memory_space<vmem>>, vector<64x32xf32>,
    return
  }
  func.func @transform_0(%arg0: i32) -> (i32, i32) {
    %c0_i32 = arith.constant 0 : i32
    %c0_i32_0 = arith.constant 0 : i32
    return %arg0, %c0_i32 : i32, i32
  }
  func.func @transform_1(%arg0: i32) -> (i32, i32) {
    %c0_i32 = arith.constant 0 : i32
    %c0_i32_0 = arith.constant 0 : i32
    %c0_i32_1 = arith.constant 0 : i32
    return %c0_i32, %c0_i32_0 : i32, i32
  }
  func.func @transform_2(%arg0: i32) -> (i32, i32) {
    %c0_i32 = arith.constant 0 : i32
    %c0_i32_0 = arith.constant 0 : i32
    return %arg0, %c0_i32 : i32, i32
  }
}

</mosaic_0001>

<llo_original>
// kernel: tpu_custom_call.1
$region0: #{tpu_custom_call.1}
  #allocation0 [shape = 'u32[]', space=smem, size = 0x4, offset = 0x4, fixed_abs, tag = 'smem constant byte address 0x4 - core index']
  #allocation1 [shape = 'u32[144,128]{1,0:T(1,128)}', space=vmem, size = 0x12000, scoped, tag = 'internal scratch']
  %s0 = inlined_call_operand.vmem [shape: f32[128,16], index: 0, kind: input, shape index: {}]
  %s1 = inlined_call_operand.vmem [shape: f32[16,32], index: 1, kind: input, shape index: {}]
  %s2 = inlined_call_operand.vmem [shape: f32[128,32], index: 2, kind: output, shape index: {}]
  %s3 = sld [smem:[#allocation0]]
  $region41: #{tpu_custom_call.1} parent=0
    _
  %s5 = ssub.s32 1, %s3
  %s6 = scalar_select 0, %s5, %s3
  loop: start=0, step=1, limit=4
  $region2: #{tpu_custom_call.1} parent=0 // loop_pre_header
    _
  $region3: #{tpu_custom_call.1} parent=0 // loop_header
    %s8 = sphi 0, %s12
    %p9 = scmp.ge.s32.totalorder %s8, 4
    %s18 = sphi 0, %s20
    %s21 = sphi 0, %s18
    %s22 = sphi 0, %s21
    %s38 = sphi 0, %s22
    %s42 = sphi 0, %s42
    %s44 = sphi 0, %s42
    %s45 = sphi 0, %s44
    %s59 = sphi 0, %s45
    %s65 = sphi 0, %s67
    %s68 = sphi 0, %s65
    %s69 = sphi 0, %s68
    %s85 = sphi 0, %s69
  $region4: #{tpu_custom_call.1} parent=0 // loop_header_branch
    %11 = sbr.rel (%p9) target = $region8
  $region5: #{tpu_custom_call.1} parent=0 // loop_body
    %s13 = ssub.s32 %s8, 1
    %s14 = ssub.s32 %s8, 2
    %s15 = sadd.s32 %s8, 1
    %s16 = ssub.s32 %s8, %s15
    %p17 = scmp.eq.s32.totalorder %s16, 0
    %s19 = sadd.s32 %s18, 1
    %s20 = scalar_select %p17, %s18, %s19
    %p23 = pneg %p17
    %p24 = scmp.eq.s32.totalorder %s8, 1
    %p25 = por %p23, %p24
    %p26 = scmp.ne.s32.totalorder %s18, %s21
    %p27 = scmp.eq.s32.totalorder %s8, 0
    %p28 = por %p26, %p27
    %p29 = scmp.ne.s32.totalorder %s18, %s21
    %p30 = scmp.eq.s32.totalorder %s13, 1
    %p31 = por %p29, %p30
    %p32 = scmp.ne.s32.totalorder %s21, %s22
    %p33 = scmp.eq.s32.totalorder %s13, 0
    %p34 = por %p32, %p33
    %p35 = scmp.ne.s32.totalorder %s21, %s22
    %p36 = scmp.eq.s32.totalorder %s14, 1
    %p37 = por %p35, %p36
    %p39 = scmp.ne.s32.totalorder %s22, %s38
    %p40 = scmp.eq.s32.totalorder %s14, 0
    %p41 = por %p39, %p40
    %s43 = sadd.s32 %s42, 1
    %p46 = scmp.eq.s32.totalorder %s8, 1
    %p47 = scmp.ne.s32.totalorder %s42, %s44
    %p48 = scmp.eq.s32.totalorder %s8, 0
    %p49 = por %p47, %p48
    %p50 = scmp.ne.s32.totalorder %s42, %s44
    %p51 = scmp.eq.s32.totalorder %s13, 1
    %p52 = por %p50, %p51
    %p53 = scmp.ne.s32.totalorder %s44, %s45
    %p54 = scmp.eq.s32.totalorder %s13, 0
    %p55 = por %p53, %p54
    %p56 = scmp.ne.s32.totalorder %s44, %s45
    %p57 = scmp.eq.s32.totalorder %s14, 1
    %p58 = por %p56, %p57
    %p60 = scmp.ne.s32.totalorder %s45, %s59
    %p61 = scmp.eq.s32.totalorder %s14, 0
    %p62 = por %p60, %p61
    %s63 = ssub.s32 %s8, %s15
    %p64 = scmp.eq.s32.totalorder %s63, 0
    %s66 = sadd.s32 %s65, 1
    %s67 = scalar_select %p64, %s65, %s66
    %p70 = pneg %p64
    %p71 = scmp.eq.s32.totalorder %s8, 1
    %p72 = por %p70, %p71
    %p73 = scmp.ne.s32.totalorder %s65, %s68
    %p74 = scmp.eq.s32.totalorder %s8, 0
    %p75 = por %p73, %p74
    %p76 = scmp.ne.s32.totalorder %s65, %s68
    %p77 = scmp.eq.s32.totalorder %s13, 1
    %p78 = por %p76, %p77
    %p79 = scmp.ne.s32.totalorder %s68, %s69
    %p80 = scmp.eq.s32.totalorder %s13, 0
    %p81 = por %p79, %p80
    %p82 = scmp.ne.s32.totalorder %s68, %s69
    %p83 = scmp.eq.s32.totalorder %s14, 1
    %p84 = por %p82, %p83
    %p86 = scmp.ne.s32.totalorder %s69, %s85
    %p87 = scmp.eq.s32.totalorder %s14, 0
    %p88 = por %p86, %p87
    %p89 = scmp.le.s32.totalorder 1, %s8
    %p90 = scmp.lt.s32.totalorder %s8, 3
    %p91 = pnand %p89, %p90
    %p92 = pneg %p91
    // Predicated region
    $region9: #{tpu_custom_call.1} parent=5 // pred_check
      _
    $region10: #{tpu_custom_call.1} parent=5 // pred_check_branch
      %94 = sbr.rel (%p91) target = $region12
    $region11: #{tpu_custom_call.1} parent=5 // pred_region
      %s95 = ssub.s32 %s8, 1
      // Predicated region
      $region13: #{tpu_custom_call.1} parent=11 // pred_check
        %p96 = pneg %p55
      $region14: #{tpu_custom_call.1} parent=11 // pred_check_branch
        %98 = sbr.rel (%p96) target = $region16
      $region15: #{tpu_custom_call.1} parent=11 // pred_region
        _
      $region16: #{tpu_custom_call.1} parent=11 // pred_fallthru
        _
    $region12: #{tpu_custom_call.1} parent=5 // pred_fallthru
      _
    %p99 = scmp.lt.s32.totalorder %s8, 2
    // Predicated region
    $region17: #{tpu_custom_call.1} parent=5 // pred_check
      %p100 = pneg %p99
    $region18: #{tpu_custom_call.1} parent=5 // pred_check_branch
      %102 = sbr.rel (%p100) target = $region20
    $region19: #{tpu_custom_call.1} parent=5 // pred_region
      // Predicated region
      $region21: #{tpu_custom_call.1} parent=19 // pred_check
        %p103 = pneg %p28
      $region22: #{tpu_custom_call.1} parent=19 // pred_check_branch
        %105 = sbr.rel (%p103) target = $region24
      $region23: #{tpu_custom_call.1} parent=19 // pred_region
        %s106 = smul.u32 8, %s8
        %p107 = scmp.lt.s32.totalorder %s106, 15
        %s108 = scalar_select %p107, %s106, 15
        %s109 = smul.addr %s108, 8
        %s110 = scalar_lea.vmem %s0, %s109
        %s111 = smul.u32 8, %s8
      $region24: #{tpu_custom_call.1} parent=19 // pred_fallthru
        _
    $region20: #{tpu_custom_call.1} parent=5 // pred_fallthru
      _
    %p112 = scmp.le.s32.totalorder 1, %s8
    %p113 = scmp.lt.s32.totalorder %s8, 3
    %p114 = pnand %p112, %p113
    %p115 = pneg %p114
    // Predicated region
    $region25: #{tpu_custom_call.1} parent=5 // pred_check
      _
    $region26: #{tpu_custom_call.1} parent=5 // pred_check_branch
      %117 = sbr.rel (%p114) target = $region28
    $region27: #{tpu_custom_call.1} parent=5 // pred_region
      %s118 = ssub.s32 %s8, 1
      %s119 = smul.u32 8, %s13
      %p120 = scmp.lt.s32.totalorder %s119, 15
      %s121 = scalar_select %p120, %s119, 15
      %s122 = smul.addr %s121, 8
      %s123 = scalar_lea.vmem %s0, %s122
      %p124 = pneg %p34
      %p125 = pneg %p31
      %p126 = pneg %p55
      %p127 = pneg %p52
      %p128 = pneg %p81
      %p129 = pneg %p78
      %s130 = smul.u32 8, %s13
      %p131 = scmp.lt.s32.totalorder %s130, 15
      %s132 = scalar_select %p131, %s130, 15
      %s133 = smul.addr %s132, 8
      %s134 = scalar_lea.vmem %s2, %s133
      %s135 = smul.u32 8, %s13
      %p136 = scmp.lt.s32.totalorder %s135, 15
      %s137 = scalar_select %p136, %s135, 15
      %s138 = smul.addr %s137, 8
      %s139 = scalar_lea.vmem %s0, %s138
      %s140 = smul.u32 8, %s13
      %s141 = smul.u32 8, %s13
      %p142 = scmp.lt.s32.totalorder %s141, 15
      %s143 = scalar_select %p142, %s141, 15
      %s144 = smul.addr %s143, 8
      %s145 = scalar_lea.vmem %s2, %s144
      %s146 = smul.u32 8, %s13
      %v147 = vld [vmem:[%s139] sm:$0xff]
      %v148 = vld [vmem:[%s139 + $0x8] sm:$0xff]
      %v149 = vld [vmem:[%s139 + $0x10] sm:$0xff]
      %v150 = vld [vmem:[%s139 + $0x18] sm:$0xff]
      %v151 = vld [vmem:[%s139 + $0x20] sm:$0xff]
      %v152 = vld [vmem:[%s139 + $0x28] sm:$0xff]
      %v153 = vld [vmem:[%s139 + $0x30] sm:$0xff]
      %v154 = vld [vmem:[%s139 + $0x38] sm:$0xff]
      %v155 = vld [vmem:[%s1] sm:$0xff]
      %v156 = vld [vmem:[%s1 + $0x8] sm:$0xff]
      %vm157 = vcmask 130048
      %v159 = vsel %vm157, %v147, 0
      %v162 = vsel %vm157, %v148, 0
      %v165 = vsel %vm157, %v149, 0
      %v168 = vsel %vm157, %v150, 0
      %v171 = vsel %vm157, %v151, 0
      %v174 = vsel %vm157, %v152, 0
      %v177 = vsel %vm157, %v153, 0
      %v180 = vsel %vm157, %v154, 0
      %182 = vmatprep.subr.mxu0 0.0
      %183 = vmatpush1.msra.mxu0 0.0
      %184 = vmatprep.subr.mxu0 0.0
      %185 = vmatpush1.msra.mxu0 0.0
      %186 = vmatprep.subr.mxu0 0.0
      %187 = vmatpush1.msra.mxu0 0.0
      %188 = vmatprep.subr.mxu0 0.0
      %189 = vmatpush1.msra.mxu0 0.0
      %190 = vmatprep.subr.mxu0 0.0
      %191 = vmatpush1.msra.mxu0 0.0
      %192 = vmatprep.subr.mxu0 0.0
      %193 = vmatpush1.msra.mxu0 0.0
      %194 = vmatprep.subr.mxu0 0.0
      %195 = vmatpush1.msra.mxu0 0.0
      %196 = vmatprep.subr.mxu0 0.0
      %197 = vmatpush1.msra.mxu0 0.0
      %198 = vmatprep.subr.mxu0 0.0
      %199 = vmatpush1.msra.mxu0 0.0
      %200 = vmatprep.subr.mxu0 0.0
      %201 = vmatpush1.msra.mxu0 0.0
      %202 = vmatprep.subr.mxu0 0.0
      %203 = vmatpush1.msra.mxu0 0.0
      %204 = vmatprep.subr.mxu0 0.0
      %205 = vmatpush1.msra.mxu0 0.0
      %206 = vmatprep.subr.mxu0 0.0
      %207 = vmatpush1.msra.mxu0 0.0
      %208 = vmatprep.subr.mxu0 0.0
      %209 = vmatpush1.msra.mxu0 0.0
      %210 = vmatprep.subr.mxu0 0.0
      %211 = vmatpush1.msra.mxu0 %v156
      %212 = vmatprep.subr.mxu0 0.0
      %213 = vmatpush1.msra.mxu0 %v155
      %214 = vmatprep.subr.mxu0 0.0
      %215 = vmatpush2.msra.mxu0 0.0
      %216 = vmatprep.subr.mxu0 0.0
      %217 = vmatpush2.msra.mxu0 0.0
      %218 = vmatprep.subr.mxu0 0.0
      %219 = vmatpush2.msra.mxu0 0.0
      %220 = vmatprep.subr.mxu0 0.0
      %221 = vmatpush2.msra.mxu0 0.0
      %222 = vmatprep.subr.mxu0 0.0
      %223 = vmatpush2.msra.mxu0 0.0
      %224 = vmatprep.subr.mxu0 0.0
      %225 = vmatpush2.msra.mxu0 0.0
      %226 = vmatprep.subr.mxu0 0.0
      %227 = vmatpush2.msra.mxu0 0.0
      %228 = vmatprep.subr.mxu0 0.0
      %229 = vmatpush2.msra.mxu0 0.0
      %230 = vmatprep.subr.mxu0 0.0
      %231 = vmatpush2.msra.mxu0 0.0
      %232 = vmatprep.subr.mxu0 0.0
      %233 = vmatpush2.msra.mxu0 0.0
      %234 = vmatprep.subr.mxu0 0.0
      %235 = vmatpush2.msra.mxu0 0.0
      %236 = vmatprep.subr.mxu0 0.0
      %237 = vmatpush2.msra.mxu0 0.0
      %238 = vmatprep.subr.mxu0 0.0
      %239 = vmatpush2.msra.mxu0 0.0
      %240 = vmatprep.subr.mxu0 0.0
      %241 = vmatpush2.msra.mxu0 0.0
      %242 = vmatprep.subr.mxu0 0.0
      %243 = vmatpush2.msra.mxu0 0.0
      %244 = vmatprep.subr.mxu0 0.0
      %245 = vmatpush2.msra.mxu0 0.0
      %246 = vmatprep.mubr.f32.mxu0 0.0
      %247 = vmatmul.mubr.f32.gmra.mxu0 %v159
      %v248 = vpop.f32.mrf.mxu0
      %v249 = vadd.f32 0.0, %v248
      %v250 = vpop.f32.mrf.mxu0
      %251 = vmatprep.mubr.f32.mxu0 0.0
      %252 = vmatmul.mubr.f32.gmra.mxu0 %v162
      %v253 = vpop.f32.mrf.mxu0
      %v254 = vadd.f32 0.0, %v253
      %v255 = vpop.f32.mrf.mxu0
      %256 = vmatprep.mubr.f32.mxu0 0.0
      %257 = vmatmul.mubr.f32.gmra.mxu0 %v165
      %v258 = vpop.f32.mrf.mxu0
      %v259 = vadd.f32 0.0, %v258
      %v260 = vpop.f32.mrf.mxu0
      %261 = vmatprep.mubr.f32.mxu0 0.0
      %262 = vmatmul.mubr.f32.gmra.mxu0 %v168
      %v263 = vpop.f32.mrf.mxu0
      %v264 = vadd.f32 0.0, %v263
      %v265 = vpop.f32.mrf.mxu0
      %266 = vmatprep.mubr.f32.mxu0 0.0
      %267 = vmatmul.mubr.f32.gmra.mxu0 %v171
      %v268 = vpop.f32.mrf.mxu0
      %v269 = vadd.f32 0.0, %v268
      %v270 = vpop.f32.mrf.mxu0
      %271 = vmatprep.mubr.f32.mxu0 0.0
      %272 = vmatmul.mubr.f32.gmra.mxu0 %v174
      %v273 = vpop.f32.mrf.mxu0
      %v274 = vadd.f32 0.0, %v273
      %v275 = vpop.f32.mrf.mxu0
      %276 = vmatprep.mubr.f32.mxu0 0.0
      %277 = vmatmul.mubr.f32.gmra.mxu0 %v177
      %v278 = vpop.f32.mrf.mxu0
      %v279 = vadd.f32 0.0, %v278
      %v280 = vpop.f32.mrf.mxu0
      %281 = vmatprep.mubr.f32.mxu0 0.0
      %282 = vmatmul.mubr.f32.gmra.mxu0 %v180
      %v283 = vpop.f32.mrf.mxu0
      %v284 = vadd.f32 0.0, %v283
      %v285 = vpop.f32.mrf.mxu0
      %286 = vdwg.mxu0
      %vm287 = vcmask 261120
      %288 = vst.msk [vmem:[%s145] sm:$0xff] %vm287, %v249
      %289 = vst.msk [vmem:[%s145 + $0x8] sm:$0xff] %vm287, %v254
      %290 = vst.msk [vmem:[%s145 + $0x10] sm:$0xff] %vm287, %v259
      %291 = vst.msk [vmem:[%s145 + $0x18] sm:$0xff] %vm287, %v264
      %292 = vst.msk [vmem:[%s145 + $0x20] sm:$0xff] %vm287, %v269
      %293 = vst.msk [vmem:[%s145 + $0x28] sm:$0xff] %vm287, %v274
      %294 = vst.msk [vmem:[%s145 + $0x30] sm:$0xff] %vm287, %v279
      %295 = vst.msk [vmem:[%s145 + $0x38] sm:$0xff] %vm287, %v284
      %s296 = smul.u32 8, %s13
      %p297 = scmp.lt.s32.totalorder %s296, 15
      %s298 = scalar_select %p297, %s296, 15
      %s299 = smul.addr %s298, 8
      %s300 = scalar_lea.vmem %s2, %s299
      // Predicated region
      $region29: #{tpu_custom_call.1} parent=27 // pred_check
        %p301 = pneg %p78
      $region30: #{tpu_custom_call.1} parent=27 // pred_check_branch
        %303 = sbr.rel (%p301) target = $region32
      $region31: #{tpu_custom_call.1} parent=27 // pred_region
        %s304 = smul.u32 8, %s13
      $region32: #{tpu_custom_call.1} parent=27 // pred_fallthru
        _
    $region28: #{tpu_custom_call.1} parent=5 // pred_fallthru
      _
    %p305 = scmp.le.s32.totalorder 2, %s8
    // Predicated region
    $region33: #{tpu_custom_call.1} parent=5 // pred_check
      %p306 = pneg %p305
    $region34: #{tpu_custom_call.1} parent=5 // pred_check_branch
      %308 = sbr.rel (%p306) target = $region36
    $region35: #{tpu_custom_call.1} parent=5 // pred_region
      %s309 = ssub.s32 %s8, 2
      // Predicated region
      $region37: #{tpu_custom_call.1} parent=35 // pred_check
        %p310 = pneg %p84
      $region38: #{tpu_custom_call.1} parent=35 // pred_check_branch
        %312 = sbr.rel (%p310) target = $region40
      $region39: #{tpu_custom_call.1} parent=35 // pred_region
        %s313 = smul.u32 8, %s14
        %p314 = scmp.lt.s32.totalorder %s313, 15
        %s315 = scalar_select %p314, %s313, 15
        %s316 = smul.addr %s315, 8
        %s317 = scalar_lea.vmem %s2, %s316
      $region40: #{tpu_custom_call.1} parent=35 // pred_fallthru
        _
    $region36: #{tpu_custom_call.1} parent=5 // pred_fallthru
      _
  $region6: #{tpu_custom_call.1} parent=0 // loop_footer
    %s12 = sadd.s32 1, %s8
  $region7: #{tpu_custom_call.1} parent=0 // loop_footer_branch
    %7 = sbr.rel target = $region3
  $region8: #{tpu_custom_call.1} parent=0 // loop_exit
    _

</llo_original>
